<compile_context>
chip_gen: v7x
topology: tpu7x:2x2x1
jax: 0.10.0
libtpu: 0.0.40
codegen_flags: <defaults>
</compile_context>

<pallas_src>
import math

import jax
import jax.numpy as jnp
from jax.experimental import pallas as pl
from jax.experimental.pallas import tpu as pltpu


def _build_pe(d_model: int, max_len: int = 200) -> jnp.ndarray:
    """Sinusoidal positional-encoding buffer, shape (1, max_len, d_model), f32."""
    position = jnp.arange(max_len, dtype=jnp.float32)[:, None]              # (max_len, 1)
    div_term = jnp.exp(
        jnp.arange(0, d_model, 2, dtype=jnp.float32) * (-math.log(10000.0) / d_model)
    )                                                                        # (d_model//2,)
    pe = jnp.zeros((max_len, d_model), dtype=jnp.float32)
    pe = pe.at[:, 0::2].set(jnp.sin(position * div_term))
    pe = pe.at[:, 1::2].set(jnp.cos(position * div_term))
    return pe[None, :, :]                                                    # (1, max_len, d_model)


def _posenc_kernel(x_ref, pe_ref, o_ref):
    # x_ref: (tile_B, tile_L); pe_ref: (1, tile_L) broadcasts over rows.
    # Dropout p=0.0 -> identity, nothing else to do.
    o_ref[...] = x_ref[...] + pe_ref[...]


def _choose_tiles(B: int, L: int, itemsize: int):
    # Row (batch) tile: second-to-last block dim must be a multiple of 8 or the full dim.
    tile_B = min(B, 256) if B % 8 == 0 else B
    # Column tile: last block dim must be a multiple of 128 or the full dim.
    # Cap per-tile x footprint at ~2 MiB so double-buffered (x-in, pe, out) tiles
    # stay well under the scoped-VMEM default on every generation (incl. v7x).
    if L % 128 == 0:
        budget = 2 * 1024 * 1024
        max_cols = max(128, (budget // max(1, tile_B * itemsize)) // 128 * 128)
        tile_L = min(L, max_cols)
    else:
        tile_L = L
    return tile_B, tile_L


@jax.jit
def _positional_encoding_pallas(x: jnp.ndarray, pe_slice: jnp.ndarray) -> jnp.ndarray:
    """x: (B, S, D); pe_slice: (1, S, D) already in x.dtype."""
    B, S, D = x.shape
    L = S * D

    # Lane-dense 2D views (reshapes are bitcasts under jit).
    x2d = x.reshape(B, L)
    pe2d = pe_slice.reshape(1, L)

    tile_B, tile_L = _choose_tiles(B, L, x.dtype.itemsize)

    # Rows innermost (last grid axis): pe block index (0, j) is unchanged across
    # consecutive inner iterations, so its tile stays resident (no re-DMA).
    grid = (pl.cdiv(L, tile_L), pl.cdiv(B, tile_B))

    out2d = pl.pallas_call(
        _posenc_kernel,
        out_shape=jax.ShapeDtypeStruct((B, L), x.dtype),
        grid_spec=pltpu.PrefetchScalarGridSpec(
            num_scalar_prefetch=0,
            grid=grid,
            in_specs=[
                pl.BlockSpec((tile_B, tile_L), lambda j, i: (i, j)),  # x rows
                pl.BlockSpec((1, tile_L), lambda j, i: (0, j)),       # pe, broadcast over rows
            ],
            out_specs=pl.BlockSpec((tile_B, tile_L), lambda j, i: (i, j)),
        ),
        compiler_params=pltpu.CompilerParams(
            dimension_semantics=("parallel", "parallel"),
        ),
    )(x2d, pe2d)

    return out2d.reshape(B, S, D)


# Below this element count, a custom-call launch costs more than the add itself;
# let XLA fuse the plain broadcast-add instead.
_MIN_PALLAS_ELEMS = 1 << 16
# If the unavoidable tile (non 8/128-alignable shape) would blow scoped VMEM,
# fall back to XLA rather than OOM-ing the kernel.
_MAX_TILE_FOOTPRINT_BYTES = 12 * 1024 * 1024


def positional_encoding(x: jnp.ndarray, pe: jnp.ndarray, *, force_pallas: bool = False) -> jnp.ndarray:
    """x: (B, S, D); pe: (1, max_len, D) f32 buffer. Returns dropout(x + pe[:, :S, :]) with p=0."""
    B, S, D = x.shape
    pe_slice = pe[:, :S, :].astype(x.dtype)   # match x's dtype (halves pe DMA for bf16 inputs)
    if (not force_pallas) and (x.size < _MIN_PALLAS_ELEMS):
        return x + pe_slice                    # tiny: pure-XLA fusion path

    tile_B, tile_L = _choose_tiles(B, S * D, x.dtype.itemsize)
    # ~2x double-buffered x-in + out tiles, plus 2x pe tile.
    footprint = (4 * tile_B * tile_L + 2 * tile_L) * x.dtype.itemsize
    if footprint > _MAX_TILE_FOOTPRINT_BYTES:
        return x + pe_slice                    # un-tileable odd shape: let XLA handle it

    return _positional_encoding_pallas(x, pe_slice)
    # TODO(synk): dropout p>0 would need pltpu.prng_seed/prng_random_bits; module uses p=0.0.


if __name__ == "__main__":
    # Small shapes consistent with the module: batch=2, seq=8, d_model=32.
    B, S, D = 2, 8, 32
    MAX_LEN = 200

    key = jax.random.PRNGKey(0)
    x = jax.random.normal(key, (B, S, D), dtype=jnp.float32)

    pe = _build_pe(D, MAX_LEN)

    # Reference computed in plain JAX.
    ref = x + pe[:, :S, :].astype(x.dtype)

    # Force the Pallas path so the kernel is exercised even at this tiny size.
    out = positional_encoding(x, pe, force_pallas=True)
    out = jax.block_until_ready(out)

    assert out.shape == (B, S, D)
    assert jnp.allclose(out, ref, atol=1e-6), "mismatch vs reference"

    print("KERNEL_OK")
</pallas_src>

<mosaic_0001>
module attributes {stable_mosaic.version = 11 : i64} {
  func.func @_posenc_kernel(%arg0: i32, %arg1: i32, %arg2: memref<2x256xf32, #tpu.memory_space<vmem>>, %arg3: memref<1x256xf32, #tpu.memory_space<vmem>>, %arg4: memref<2x256xf32, #tpu.memory_space<vmem>>) attributes {dimension_semantics = [#tpu.dimension_semantics<parallel>, #tpu.dimension_semantics<parallel>], iteration_bounds = array<i64: 1, 1>, scalar_prefetch = 0 : i64, scratch_operands = 0 : i64, tpu.core_type = #tpu.core_type<tc>, window_params = [{transform_indices = @transform_0, window_bounds = array<i64: 2, 256>}, {transform_indices = @transform_1, window_bounds = array<i64: 1, 256>}, {transform_indices = @transform_2, window_bounds = array<i64: 2, 256>}]} {
    %c0 = arith.constant 0 : index
    %c0_0 = arith.constant 0 : index
    %0 = vector.load %arg2[%c0, %c0_0] : memref<2x256xf32, #tpu.memory_space<vmem>>, vector<2x256xf32>
    %c0_1 = arith.constant 0 : index
    %c0_2 = arith.constant 0 : index
    %1 = vector.load %arg3[%c0_1, %c0_2] : memref<1x256xf32, #tpu.memory_space<vmem>>, vector<1x256xf32>
    %2 = vector.broadcast %1 : vector<1x256xf32> to vector<2x256xf32>
    %3 = arith.addf %0, %2 : vector<2x256xf32>
    %c0_3 = arith.constant 0 : index
    %c0_4 = arith.constant 0 : index
    %4 = vector.load %arg4[%c0_3, %c0_4] : memref<2x256xf32, #tpu.memory_space<vmem>>, vector<2x256xf32>
    tpu.vector_store %arg4[%c0_3, %c0_4], %3 {strides = array<i32>} : memref<2x256xf32, #tpu.memory_space<vmem>>, vector<2x256xf32>,
    return
  }
  func.func @transform_0(%arg0: i32, %arg1: i32) -> (i32, i32) {
    %c0_i32 = arith.constant 0 : i32
    return %arg1, %arg0 : i32, i32
  }
  func.func @transform_1(%arg0: i32, %arg1: i32) -> (i32, i32) {
    %c0_i32 = arith.constant 0 : i32
    %c0_i32_0 = arith.constant 0 : i32
    return %c0_i32, %arg0 : i32, i32
  }
  func.func @transform_2(%arg0: i32, %arg1: i32) -> (i32, i32) {
    %c0_i32 = arith.constant 0 : i32
    return %arg1, %arg0 : i32, i32
  }
}

</mosaic_0001>

<llo_original>
// kernel: _positional_encoding_pallas.1
$region0: #{_positional_encoding_pallas.1}
  #allocation0 [shape = 'u32[]', space=smem, size = 0x4, offset = 0x4, fixed_abs, tag = 'smem constant byte address 0x4 - core index']
  #allocation1 [shape = 'u32[144,128]{1,0:T(1,128)}', space=vmem, size = 0x12000, scoped, tag = 'internal scratch']
  %s0 = inlined_call_operand.vmem [shape: f32[2,256], index: 0, kind: input, shape index: {}]
  %s1 = inlined_call_operand.vmem [shape: f32[1,256], index: 1, kind: input, shape index: {}]
  %s2 = inlined_call_operand.vmem [shape: f32[2,256], index: 2, kind: output, shape index: {}]
  %s3 = sld [smem:[#allocation0]]
  $region18: #{_positional_encoding_pallas.1} parent=0
    _
  %s5 = ssub.s32 1, %s3
  %s6 = scalar_select 0, %s5, %s3
  // Predicated region
  $region2: #{_positional_encoding_pallas.1} parent=0 // pred_check
    _
  $region3: #{_positional_encoding_pallas.1} parent=0 // pred_check_branch
    %8 = sbr.rel (0) target = $region5
  $region4: #{_positional_encoding_pallas.1} parent=0 // pred_region
    _
  $region5: #{_positional_encoding_pallas.1} parent=0 // pred_fallthru
    _
  // Predicated region
  $region6: #{_positional_encoding_pallas.1} parent=0 // pred_check
    _
  $region7: #{_positional_encoding_pallas.1} parent=0 // pred_check_branch
    %10 = sbr.rel (0) target = $region9
  $region8: #{_positional_encoding_pallas.1} parent=0 // pred_region
    _
  $region9: #{_positional_encoding_pallas.1} parent=0 // pred_fallthru
    _
  %v11 = vld [vmem:[%s0] sm:$0xf]
  %v12 = vld [vmem:[%s1] sm:$0x3]
  %v14 = vlaneseq
  %v15 = vshrl.u32 %v14, 7
  %v16 = vsub.s32 0, %v15
  %v17 = vrot.slane %v12, %v16
  %v18 = vlaneseq
  %v19 = vshrl.u32 %v18, 7
  %v20 = vsub.s32 1, %v19
  %v21 = vrot.slane %v12, %v20
  %v22 = vcombine.low %v17, %v21
  %v24 = vunpack.c.l.s4 1983009808
  %v25 = vunpack.c.0.s8 %v24
  %v26 = vlaneseq
  %v27 = vshrl.u32 %v26, 7
  %v28 = vsub.s32 %v25, %v27
  %v29 = vrot.slane %v22, %v28
  %v31 = vadd.f32 %v11, %v29
  %32 = vst [vmem:[%s2] sm:$0xf] %v31
  // Predicated region
  $region10: #{_positional_encoding_pallas.1} parent=0 // pred_check
    _
  $region11: #{_positional_encoding_pallas.1} parent=0 // pred_check_branch
    %34 = sbr.rel (0) target = $region13
  $region12: #{_positional_encoding_pallas.1} parent=0 // pred_region
    _
  $region13: #{_positional_encoding_pallas.1} parent=0 // pred_fallthru
    _
  // Predicated region
  $region14: #{_positional_encoding_pallas.1} parent=0 // pred_check
    _
  $region15: #{_positional_encoding_pallas.1} parent=0 // pred_check_branch
    %36 = sbr.rel (0) target = $region17
  $region16: #{_positional_encoding_pallas.1} parent=0 // pred_region
    _
  $region17: #{_positional_encoding_pallas.1} parent=0 // pred_fallthru
    _

</llo_original>
